<compile_context>
chip_gen: v7x
topology: tpu7x:2x2x1
jax: 0.10.0
libtpu: 0.0.40
codegen_flags: <defaults>
</compile_context>

<pallas_src>
import jax
import jax.numpy as jnp
from jax.experimental import pallas as pl
from jax.experimental.pallas import tpu as pltpu


def _discriminator_kernel(zt_ref, w1_ref, b1_ref, w2_ref, b2_ref, out_ref):
    zt = zt_ref[...]            # (latent_dim, T) f32, lane-dense (batch on lanes)
    w1 = w1_ref[...]            # (32, latent_dim)   PyTorch (out, in) layout
    w2 = w2_ref[...]            # (2, 32)
    latent_dim = zt.shape[0]
    hidden = w1.shape[0]

    # Layer 1: Linear(latent_dim -> 32) as `latent_dim` outer-product FMAs on
    # the VPU.  K = 8 would leave the MXU >99% idle; VALU slots are otherwise
    # free here and this keeps exact f32 accumulation.
    h = w1[:, 0:1] * zt[0:1, :] + b1_ref[...]          # (32, T)
    for k in range(1, latent_dim):
        h = h + w1[:, k:k + 1] * zt[k:k + 1, :]
    h = jnp.where(h > 0, h, 0.2 * h)                   # LeakyReLU(0.2)

    # Layer 2: Linear(32 -> 2), same scheme (K = 32).
    v = w2[:, 0:1] * h[0:1, :] + b2_ref[...]           # (2, T)
    for k in range(1, hidden):
        v = v + w2[:, k:k + 1] * h[k:k + 1, :]

    out_ref[...] = v


def _round_up(x, m):
    return (x + m - 1) // m * m


def discriminator_forward(z, w1, b1, w2, b2, *, batch_tile=2048):
    """z: (B, latent_dim) f32.  w1: (32, latent_dim), b1: (32, 1),
    w2: (2, 32), b2: (2, 1)  (PyTorch nn.Linear (out, in) weight layout).
    Returns validity logits (B, 2) f32."""
    B, latent_dim = z.shape
    hidden = w1.shape[0]
    out_dim = w2.shape[0]

    # Lane-dense layout: batch on the last (lane) dim, padded to the tile.
    tile = min(batch_tile, _round_up(B, 128))
    Bp = _round_up(B, tile)
    zt = z.T                                            # (latent_dim, B)
    if Bp != B:
        zt = jnp.pad(zt, ((0, 0), (0, Bp - B)))

    flops = 2 * B * (latent_dim * hidden + hidden * out_dim)
    bytes_accessed = 4 * (B * (latent_dim + out_dim)
                          + hidden * (latent_dim + 1) + out_dim * (hidden + 1))

    out_t = pl.pallas_call(
        _discriminator_kernel,
        out_shape=jax.ShapeDtypeStruct((out_dim, Bp), jnp.float32),
        grid_spec=pltpu.PrefetchScalarGridSpec(
            num_scalar_prefetch=0,
            grid=(Bp // tile,),
            in_specs=[
                pl.BlockSpec((latent_dim, tile), lambda i: (0, i)),    # z^T stream
                pl.BlockSpec((hidden, latent_dim), lambda i: (0, 0)),  # w1 resident
                pl.BlockSpec((hidden, 1), lambda i: (0, 0)),           # b1 resident
                pl.BlockSpec((out_dim, hidden), lambda i: (0, 0)),     # w2 resident
                pl.BlockSpec((out_dim, 1), lambda i: (0, 0)),          # b2 resident
            ],
            out_specs=pl.BlockSpec((out_dim, tile), lambda i: (0, i)),
        ),
        compiler_params=pltpu.CompilerParams(
            dimension_semantics=("parallel",),
        ),
        cost_estimate=pl.CostEstimate(
            flops=flops, transcendentals=0, bytes_accessed=bytes_accessed),
    )(zt, w1, b1, w2, b2)

    return out_t[:, :B].T                               # back to (B, 2)


def init_params(latent_dim, hidden=32, out_dim=2, seed=0):
    """Deterministic synthetic parameters in PyTorch nn.Linear (out, in) layout."""
    k1, k2, k3, k4 = jax.random.split(jax.random.PRNGKey(seed), 4)
    # PyTorch default init: U(-1/sqrt(fan_in), 1/sqrt(fan_in))
    lim1 = 1.0 / jnp.sqrt(latent_dim)
    lim2 = 1.0 / jnp.sqrt(hidden)
    w1 = jax.random.uniform(k1, (hidden, latent_dim), jnp.float32, -lim1, lim1)
    b1 = jax.random.uniform(k2, (hidden, 1), jnp.float32, -lim1, lim1)
    w2 = jax.random.uniform(k3, (out_dim, hidden), jnp.float32, -lim2, lim2)
    b2 = jax.random.uniform(k4, (out_dim, 1), jnp.float32, -lim2, lim2)
    return w1, b1, w2, b2


if __name__ == "__main__":
    latent_dim = 8
    batch = 2

    key = jax.random.PRNGKey(0)
    z = jax.random.normal(key, (batch, latent_dim), dtype=jnp.float32)

    w1, b1, w2, b2 = init_params(latent_dim)

    out = discriminator_forward(z, w1, b1, w2, b2)
    out = jax.block_until_ready(out)

    # Pure-JAX reference of the same math (HIGHEST precision so both sides are
    # exact-f32; kernel uses exact f32 VPU FMAs).
    hp = jax.lax.Precision.HIGHEST
    h_ref = jnp.dot(z, w1.T, precision=hp) + b1[:, 0][None, :]
    h_ref = jnp.where(h_ref > 0, h_ref, 0.2 * h_ref)
    ref = jnp.dot(h_ref, w2.T, precision=hp) + b2[:, 0][None, :]

    assert out.shape == (batch, 2)
    assert jnp.allclose(out, ref, atol=1e-5, rtol=1e-5)

    print("KERNEL_OK")
</pallas_src>

<mosaic_0001>
module attributes {stable_mosaic.version = 11 : i64} {
  func.func @_discriminator_kernel(%arg0: i32, %arg1: memref<8x128xf32, #tpu.memory_space<vmem>>, %arg2: memref<32x8xf32, #tpu.memory_space<vmem>>, %arg3: memref<32x1xf32, #tpu.memory_space<vmem>>, %arg4: memref<2x32xf32, #tpu.memory_space<vmem>>, %arg5: memref<2x1xf32, #tpu.memory_space<vmem>>, %arg6: memref<2x128xf32, #tpu.memory_space<vmem>>) attributes {dimension_semantics = [#tpu.dimension_semantics<parallel>], iteration_bounds = array<i64: 1>, scalar_prefetch = 0 : i64, scratch_operands = 0 : i64, tpu.core_type = #tpu.core_type<tc>, window_params = [{transform_indices = @transform_0, window_bounds = array<i64: 8, 128>}, {pipeline_mode = #tpu.pipeline_mode<synchronous>, transform_indices = @transform_1, window_bounds = array<i64: 32, 8>}, {pipeline_mode = #tpu.pipeline_mode<synchronous>, transform_indices = @transform_2, window_bounds = array<i64: 32, 1>}, {pipeline_mode = #tpu.pipeline_mode<synchronous>, transform_indices = @transform_3, window_bounds = array<i64: 2, 32>}, {pipeline_mode = #tpu.pipeline_mode<synchronous>, transform_indices = @transform_4, window_bounds = array<i64: 2, 1>}, {transform_indices = @transform_5, window_bounds = array<i64: 2, 128>}]} {
    %c0 = arith.constant 0 : index
    %c0_0 = arith.constant 0 : index
    %0 = vector.load %arg1[%c0, %c0_0] : memref<8x128xf32, #tpu.memory_space<vmem>>, vector<8x128xf32>
    %c0_1 = arith.constant 0 : index
    %c0_2 = arith.constant 0 : index
    %1 = vector.load %arg2[%c0_1, %c0_2] : memref<32x8xf32, #tpu.memory_space<vmem>>, vector<32x8xf32>
    %c0_3 = arith.constant 0 : index
    %c0_4 = arith.constant 0 : index
    %2 = vector.load %arg4[%c0_3, %c0_4] : memref<2x32xf32, #tpu.memory_space<vmem>>, vector<2x32xf32>
    %3 = vector.extract_strided_slice %1 {offsets = [0, 0], sizes = [32, 1], strides = [1, 1]} : vector<32x8xf32> to vector<32x1xf32>
    %4 = vector.extract_strided_slice %0 {offsets = [0, 0], sizes = [1, 128], strides = [1, 1]} : vector<8x128xf32> to vector<1x128xf32>
    %5 = vector.broadcast %3 : vector<32x1xf32> to vector<32x128xf32>
    %6 = vector.broadcast %4 : vector<1x128xf32> to vector<32x128xf32>
    %7 = arith.mulf %5, %6 : vector<32x128xf32>
    %c0_5 = arith.constant 0 : index
    %c0_6 = arith.constant 0 : index
    %8 = vector.load %arg3[%c0_5, %c0_6] : memref<32x1xf32, #tpu.memory_space<vmem>>, vector<32x1xf32>
    %9 = vector.broadcast %8 : vector<32x1xf32> to vector<32x128xf32>
    %10 = arith.addf %7, %9 : vector<32x128xf32>
    %11 = vector.extract_strided_slice %1 {offsets = [0, 1], sizes = [32, 1], strides = [1, 1]} : vector<32x8xf32> to vector<32x1xf32>
    %12 = vector.extract_strided_slice %0 {offsets = [1, 0], sizes = [1, 128], strides = [1, 1]} : vector<8x128xf32> to vector<1x128xf32>
    %13 = vector.broadcast %11 : vector<32x1xf32> to vector<32x128xf32>
    %14 = vector.broadcast %12 : vector<1x128xf32> to vector<32x128xf32>
    %15 = arith.mulf %13, %14 : vector<32x128xf32>
    %16 = arith.addf %10, %15 : vector<32x128xf32>
    %17 = vector.extract_strided_slice %1 {offsets = [0, 2], sizes = [32, 1], strides = [1, 1]} : vector<32x8xf32> to vector<32x1xf32>
    %18 = vector.extract_strided_slice %0 {offsets = [2, 0], sizes = [1, 128], strides = [1, 1]} : vector<8x128xf32> to vector<1x128xf32>
    %19 = vector.broadcast %17 : vector<32x1xf32> to vector<32x128xf32>
    %20 = vector.broadcast %18 : vector<1x128xf32> to vector<32x128xf32>
    %21 = arith.mulf %19, %20 : vector<32x128xf32>
    %22 = arith.addf %16, %21 : vector<32x128xf32>
    %23 = vector.extract_strided_slice %1 {offsets = [0, 3], sizes = [32, 1], strides = [1, 1]} : vector<32x8xf32> to vector<32x1xf32>
    %24 = vector.extract_strided_slice %0 {offsets = [3, 0], sizes = [1, 128], strides = [1, 1]} : vector<8x128xf32> to vector<1x128xf32>
    %25 = vector.broadcast %23 : vector<32x1xf32> to vector<32x128xf32>
    %26 = vector.broadcast %24 : vector<1x128xf32> to vector<32x128xf32>
    %27 = arith.mulf %25, %26 : vector<32x128xf32>
    %28 = arith.addf %22, %27 : vector<32x128xf32>
    %29 = vector.extract_strided_slice %1 {offsets = [0, 4], sizes = [32, 1], strides = [1, 1]} : vector<32x8xf32> to vector<32x1xf32>
    %30 = vector.extract_strided_slice %0 {offsets = [4, 0], sizes = [1, 128], strides = [1, 1]} : vector<8x128xf32> to vector<1x128xf32>
    %31 = vector.broadcast %29 : vector<32x1xf32> to vector<32x128xf32>
    %32 = vector.broadcast %30 : vector<1x128xf32> to vector<32x128xf32>
    %33 = arith.mulf %31, %32 : vector<32x128xf32>
    %34 = arith.addf %28, %33 : vector<32x128xf32>
    %35 = vector.extract_strided_slice %1 {offsets = [0, 5], sizes = [32, 1], strides = [1, 1]} : vector<32x8xf32> to vector<32x1xf32>
    %36 = vector.extract_strided_slice %0 {offsets = [5, 0], sizes = [1, 128], strides = [1, 1]} : vector<8x128xf32> to vector<1x128xf32>
    %37 = vector.broadcast %35 : vector<32x1xf32> to vector<32x128xf32>
    %38 = vector.broadcast %36 : vector<1x128xf32> to vector<32x128xf32>
    %39 = arith.mulf %37, %38 : vector<32x128xf32>
    %40 = arith.addf %34, %39 : vector<32x128xf32>
    %41 = vector.extract_strided_slice %1 {offsets = [0, 6], sizes = [32, 1], strides = [1, 1]} : vector<32x8xf32> to vector<32x1xf32>
    %42 = vector.extract_strided_slice %0 {offsets = [6, 0], sizes = [1, 128], strides = [1, 1]} : vector<8x128xf32> to vector<1x128xf32>
    %43 = vector.broadcast %41 : vector<32x1xf32> to vector<32x128xf32>
    %44 = vector.broadcast %42 : vector<1x128xf32> to vector<32x128xf32>
    %45 = arith.mulf %43, %44 : vector<32x128xf32>
    %46 = arith.addf %40, %45 : vector<32x128xf32>
    %47 = vector.extract_strided_slice %1 {offsets = [0, 7], sizes = [32, 1], strides = [1, 1]} : vector<32x8xf32> to vector<32x1xf32>
    %48 = vector.extract_strided_slice %0 {offsets = [7, 0], sizes = [1, 128], strides = [1, 1]} : vector<8x128xf32> to vector<1x128xf32>
    %49 = vector.broadcast %47 : vector<32x1xf32> to vector<32x128xf32>
    %50 = vector.broadcast %48 : vector<1x128xf32> to vector<32x128xf32>
    %51 = arith.mulf %49, %50 : vector<32x128xf32>
    %52 = arith.addf %46, %51 : vector<32x128xf32>
    %cst = arith.constant 0.000000e+00 : f32
    %53 = vector.broadcast %cst : f32 to vector<32x128xf32>
    %54 = arith.cmpf ogt, %52, %53 : vector<32x128xf32>
    %cst_7 = arith.constant 2.000000e-01 : f32
    %55 = vector.broadcast %cst_7 : f32 to vector<32x128xf32>
    %56 = arith.mulf %55, %52 : vector<32x128xf32>
    %57 = arith.select %54, %52, %56 : vector<32x128xi1>, vector<32x128xf32>
    %58 = vector.extract_strided_slice %2 {offsets = [0, 0], sizes = [2, 1], strides = [1, 1]} : vector<2x32xf32> to vector<2x1xf32>
    %59 = vector.extract_strided_slice %57 {offsets = [0, 0], sizes = [1, 128], strides = [1, 1]} : vector<32x128xf32> to vector<1x128xf32>
    %60 = vector.broadcast %58 : vector<2x1xf32> to vector<2x128xf32>
    %61 = vector.broadcast %59 : vector<1x128xf32> to vector<2x128xf32>
    %62 = arith.mulf %60, %61 : vector<2x128xf32>
    %c0_8 = arith.constant 0 : index
    %c0_9 = arith.constant 0 : index
    %63 = vector.load %arg5[%c0_8, %c0_9] : memref<2x1xf32, #tpu.memory_space<vmem>>, vector<2x1xf32>
    %64 = vector.broadcast %63 : vector<2x1xf32> to vector<2x128xf32>
    %65 = arith.addf %62, %64 : vector<2x128xf32>
    %66 = vector.extract_strided_slice %2 {offsets = [0, 1], sizes = [2, 1], strides = [1, 1]} : vector<2x32xf32> to vector<2x1xf32>
    %67 = vector.extract_strided_slice %57 {offsets = [1, 0], sizes = [1, 128], strides = [1, 1]} : vector<32x128xf32> to vector<1x128xf32>
    %68 = vector.broadcast %66 : vector<2x1xf32> to vector<2x128xf32>
    %69 = vector.broadcast %67 : vector<1x128xf32> to vector<2x128xf32>
    %70 = arith.mulf %68, %69 : vector<2x128xf32>
    %71 = arith.addf %65, %70 : vector<2x128xf32>
    %72 = vector.extract_strided_slice %2 {offsets = [0, 2], sizes = [2, 1], strides = [1, 1]} : vector<2x32xf32> to vector<2x1xf32>
    %73 = vector.extract_strided_slice %57 {offsets = [2, 0], sizes = [1, 128], strides = [1, 1]} : vector<32x128xf32> to vector<1x128xf32>
    %74 = vector.broadcast %72 : vector<2x1xf32> to vector<2x128xf32>
    %75 = vector.broadcast %73 : vector<1x128xf32> to vector<2x128xf32>
    %76 = arith.mulf %74, %75 : vector<2x128xf32>
    %77 = arith.addf %71, %76 : vector<2x128xf32>
    %78 = vector.extract_strided_slice %2 {offsets = [0, 3], sizes = [2, 1], strides = [1, 1]} : vector<2x32xf32> to vector<2x1xf32>
    %79 = vector.extract_strided_slice %57 {offsets = [3, 0], sizes = [1, 128], strides = [1, 1]} : vector<32x128xf32> to vector<1x128xf32>
    %80 = vector.broadcast %78 : vector<2x1xf32> to vector<2x128xf32>
    %81 = vector.broadcast %79 : vector<1x128xf32> to vector<2x128xf32>
    %82 = arith.mulf %80, %81 : vector<2x128xf32>
    %83 = arith.addf %77, %82 : vector<2x128xf32>
    %84 = vector.extract_strided_slice %2 {offsets = [0, 4], sizes = [2, 1], strides = [1, 1]} : vector<2x32xf32> to vector<2x1xf32>
    %85 = vector.extract_strided_slice %57 {offsets = [4, 0], sizes = [1, 128], strides = [1, 1]} : vector<32x128xf32> to vector<1x128xf32>
    %86 = vector.broadcast %84 : vector<2x1xf32> to vector<2x128xf32>
    %87 = vector.broadcast %85 : vector<1x128xf32> to vector<2x128xf32>
    %88 = arith.mulf %86, %87 : vector<2x128xf32>
    %89 = arith.addf %83, %88 : vector<2x128xf32>
    %90 = vector.extract_strided_slice %2 {offsets = [0, 5], sizes = [2, 1], strides = [1, 1]} : vector<2x32xf32> to vector<2x1xf32>
    %91 = vector.extract_strided_slice %57 {offsets = [5, 0], sizes = [1, 128], strides = [1, 1]} : vector<32x128xf32> to vector<1x128xf32>
    %92 = vector.broadcast %90 : vector<2x1xf32> to vector<2x128xf32>
    %93 = vector.broadcast %91 : vector<1x128xf32> to vector<2x128xf32>
    %94 = arith.mulf %92, %93 : vector<2x128xf32>
    %95 = arith.addf %89, %94 : vector<2x128xf32>
    %96 = vector.extract_strided_slice %2 {offsets = [0, 6], sizes = [2, 1], strides = [1, 1]} : vector<2x32xf32> to vector<2x1xf32>
    %97 = vector.extract_strided_slice %57 {offsets = [6, 0], sizes = [1, 128], strides = [1, 1]} : vector<32x128xf32> to vector<1x128xf32>
    %98 = vector.broadcast %96 : vector<2x1xf32> to vector<2x128xf32>
    %99 = vector.broadcast %97 : vector<1x128xf32> to vector<2x128xf32>
    %100 = arith.mulf %98, %99 : vector<2x128xf32>
    %101 = arith.addf %95, %100 : vector<2x128xf32>
    %102 = vector.extract_strided_slice %2 {offsets = [0, 7], sizes = [2, 1], strides = [1, 1]} : vector<2x32xf32> to vector<2x1xf32>
    %103 = vector.extract_strided_slice %57 {offsets = [7, 0], sizes = [1, 128], strides = [1, 1]} : vector<32x128xf32> to vector<1x128xf32>
    %104 = vector.broadcast %102 : vector<2x1xf32> to vector<2x128xf32>
    %105 = vector.broadcast %103 : vector<1x128xf32> to vector<2x128xf32>
    %106 = arith.mulf %104, %105 : vector<2x128xf32>
    %107 = arith.addf %101, %106 : vector<2x128xf32>
    %108 = vector.extract_strided_slice %2 {offsets = [0, 8], sizes = [2, 1], strides = [1, 1]} : vector<2x32xf32> to vector<2x1xf32>
    %109 = vector.extract_strided_slice %57 {offsets = [8, 0], sizes = [1, 128], strides = [1, 1]} : vector<32x128xf32> to vector<1x128xf32>
    %110 = vector.broadcast %108 : vector<2x1xf32> to vector<2x128xf32>
    %111 = vector.broadcast %109 : vector<1x128xf32> to vector<2x128xf32>
    %112 = arith.mulf %110, %111 : vector<2x128xf32>
    %113 = arith.addf %107, %112 : vector<2x128xf32>
    %114 = vector.extract_strided_slice %2 {offsets = [0, 9], sizes = [2, 1], strides = [1, 1]} : vector<2x32xf32> to vector<2x1xf32>
    %115 = vector.extract_strided_slice %57 {offsets = [9, 0], sizes = [1, 128], strides = [1, 1]} : vector<32x128xf32> to vector<1x128xf32>
    %116 = vector.broadcast %114 : vector<2x1xf32> to vector<2x128xf32>
    %117 = vector.broadcast %115 : vector<1x128xf32> to vector<2x128xf32>
    %118 = arith.mulf %116, %117 : vector<2x128xf32>
    %119 = arith.addf %113, %118 : vector<2x128xf32>
    %120 = vector.extract_strided_slice %2 {offsets = [0, 10], sizes = [2, 1], strides = [1, 1]} : vector<2x32xf32> to vector<2x1xf32>
    %121 = vector.extract_strided_slice %57 {offsets = [10, 0], sizes = [1, 128], strides = [1, 1]} : vector<32x128xf32> to vector<1x128xf32>
    %122 = vector.broadcast %120 : vector<2x1xf32> to vector<2x128xf32>
    %123 = vector.broadcast %121 : vector<1x128xf32> to vector<2x128xf32>
    %124 = arith.mulf %122, %123 : vector<2x128xf32>
    %125 = arith.addf %119, %124 : vector<2x128xf32>
    %126 = vector.extract_strided_slice %2 {offsets = [0, 11], sizes = [2, 1], strides = [1, 1]} : vector<2x32xf32> to vector<2x1xf32>
    %127 = vector.extract_strided_slice %57 {offsets = [11, 0], sizes = [1, 128], strides = [1, 1]} : vector<32x128xf32> to vector<1x128xf32>
    %128 = vector.broadcast %126 : vector<2x1xf32> to vector<2x128xf32>
    %129 = vector.broadcast %127 : vector<1x128xf32> to vector<2x128xf32>
    %130 = arith.mulf %128, %129 : vector<2x128xf32>
    %131 = arith.addf %125, %130 : vector<2x128xf32>
    %132 = vector.extract_strided_slice %2 {offsets = [0, 12], sizes = [2, 1], strides = [1, 1]} : vector<2x32xf32> to vector<2x1xf32>
    %133 = vector.extract_strided_slice %57 {offsets = [12, 0], sizes = [1, 128], strides = [1, 1]} : vector<32x128xf32> to vector<1x128xf32>
    %134 = vector.broadcast %132 : vector<2x1xf32> to vector<2x128xf32>
    %135 = vector.broadcast %133 : vector<1x128xf32> to vector<2x128xf32>
    %136 = arith.mulf %134, %135 : vector<2x128xf32>
    %137 = arith.addf %131, %136 : vector<2x128xf32>
    %138 = vector.extract_strided_slice %2 {offsets = [0, 13], sizes = [2, 1], strides = [1, 1]} : vector<2x32xf32> to vector<2x1xf32>
    %139 = vector.extract_strided_slice %57 {offsets = [13, 0], sizes = [1, 128], strides = [1, 1]} : vector<32x128xf32> to vector<1x128xf32>
    %140 = vector.broadcast %138 : vector<2x1xf32> to vector<2x128xf32>
    %141 = vector.broadcast %139 : vector<1x128xf32> to vector<2x128xf32>
    %142 = arith.mulf %140, %141 : vector<2x128xf32>
    %143 = arith.addf %137, %142 : vector<2x128xf32>
    %144 = vector.extract_strided_slice %2 {offsets = [0, 14], sizes = [2, 1], strides = [1, 1]} : vector<2x32xf32> to vector<2x1xf32>
    %145 = vector.extract_strided_slice %57 {offsets = [14, 0], sizes = [1, 128], strides = [1, 1]} : vector<32x128xf32> to vector<1x128xf32>
    %146 = vector.broadcast %144 : vector<2x1xf32> to vector<2x128xf32>
    %147 = vector.broadcast %145 : vector<1x128xf32> to vector<2x128xf32>
    %148 = arith.mulf %146, %147 : vector<2x128xf32>
    %149 = arith.addf %143, %148 : vector<2x128xf32>
    %150 = vector.extract_strided_slice %2 {offsets = [0, 15], sizes = [2, 1], strides = [1, 1]} : vector<2x32xf32> to vector<2x1xf32>
    %151 = vector.extract_strided_slice %57 {offsets = [15, 0], sizes = [1, 128], strides = [1, 1]} : vector<32x128xf32> to vector<1x128xf32>
    %152 = vector.broadcast %150 : vector<2x1xf32> to vector<2x128xf32>
    %153 = vector.broadcast %151 : vector<1x128xf32> to vector<2x128xf32>
    %154 = arith.mulf %152, %153 : vector<2x128xf32>
    %155 = arith.addf %149, %154 : vector<2x128xf32>
    %156 = vector.extract_strided_slice %2 {offsets = [0, 16], sizes = [2, 1], strides = [1, 1]} : vector<2x32xf32> to vector<2x1xf32>
    %157 = vector.extract_strided_slice %57 {offsets = [16, 0], sizes = [1, 128], strides = [1, 1]} : vector<32x128xf32> to vector<1x128xf32>
    %158 = vector.broadcast %156 : vector<2x1xf32> to vector<2x128xf32>
    %159 = vector.broadcast %157 : vector<1x128xf32> to vector<2x128xf32>
    %160 = arith.mulf %158, %159 : vector<2x128xf32>
    %161 = arith.addf %155, %160 : vector<2x128xf32>
    %162 = vector.extract_strided_slice %2 {offsets = [0, 17], sizes = [2, 1], strides = [1, 1]} : vector<2x32xf32> to vector<2x1xf32>
    %163 = vector.extract_strided_slice %57 {offsets = [17, 0], sizes = [1, 128], strides = [1, 1]} : vector<32x128xf32> to vector<1x128xf32>
    %164 = vector.broadcast %162 : vector<2x1xf32> to vector<2x128xf32>
    %165 = vector.broadcast %163 : vector<1x128xf32> to vector<2x128xf32>
    %166 = arith.mulf %164, %165 : vector<2x128xf32>
    %167 = arith.addf %161, %166 : vector<2x128xf32>
    %168 = vector.extract_strided_slice %2 {offsets = [0, 18], sizes = [2, 1], strides = [1, 1]} : vector<2x32xf32> to vector<2x1xf32>
    %169 = vector.extract_strided_slice %57 {offsets = [18, 0], sizes = [1, 128], strides = [1, 1]} : vector<32x128xf32> to vector<1x128xf32>
    %170 = vector.broadcast %168 : vector<2x1xf32> to vector<2x128xf32>
    %171 = vector.broadcast %169 : vector<1x128xf32> to vector<2x128xf32>
    %172 = arith.mulf %170, %171 : vector<2x128xf32>
    %173 = arith.addf %167, %172 : vector<2x128xf32>
    %174 = vector.extract_strided_slice %2 {offsets = [0, 19], sizes = [2, 1], strides = [1, 1]} : vector<2x32xf32> to vector<2x1xf32>
    %175 = vector.extract_strided_slice %57 {offsets = [19, 0], sizes = [1, 128], strides = [1, 1]} : vector<32x128xf32> to vector<1x128xf32>
    %176 = vector.broadcast %174 : vector<2x1xf32> to vector<2x128xf32>
    %177 = vector.broadcast %175 : vector<1x128xf32> to vector<2x128xf32>
    %178 = arith.mulf %176, %177 : vector<2x128xf32>
    %179 = arith.addf %173, %178 : vector<2x128xf32>
    %180 = vector.extract_strided_slice %2 {offsets = [0, 20], sizes = [2, 1], strides = [1, 1]} : vector<2x32xf32> to vector<2x1xf32>
    %181 = vector.extract_strided_slice %57 {offsets = [20, 0], sizes = [1, 128], strides = [1, 1]} : vector<32x128xf32> to vector<1x128xf32>
    %182 = vector.broadcast %180 : vector<2x1xf32> to vector<2x128xf32>
    %183 = vector.broadcast %181 : vector<1x128xf32> to vector<2x128xf32>
    %184 = arith.mulf %182, %183 : vector<2x128xf32>
    %185 = arith.addf %179, %184 : vector<2x128xf32>
    %186 = vector.extract_strided_slice %2 {offsets = [0, 21], sizes = [2, 1], strides = [1, 1]} : vector<2x32xf32> to vector<2x1xf32>
    %187 = vector.extract_strided_slice %57 {offsets = [21, 0], sizes = [1, 128], strides = [1, 1]} : vector<32x128xf32> to vector<1x128xf32>
    %188 = vector.broadcast %186 : vector<2x1xf32> to vector<2x128xf32>
    %189 = vector.broadcast %187 : vector<1x128xf32> to vector<2x128xf32>
    %190 = arith.mulf %188, %189 : vector<2x128xf32>
    %191 = arith.addf %185, %190 : vector<2x128xf32>
    %192 = vector.extract_strided_slice %2 {offsets = [0, 22], sizes = [2, 1], strides = [1, 1]} : vector<2x32xf32> to vector<2x1xf32>
    %193 = vector.extract_strided_slice %57 {offsets = [22, 0], sizes = [1, 128], strides = [1, 1]} : vector<32x128xf32> to vector<1x128xf32>
    %194 = vector.broadcast %192 : vector<2x1xf32> to vector<2x128xf32>
    %195 = vector.broadcast %193 : vector<1x128xf32> to vector<2x128xf32>
    %196 = arith.mulf %194, %195 : vector<2x128xf32>
    %197 = arith.addf %191, %196 : vector<2x128xf32>
    %198 = vector.extract_strided_slice %2 {offsets = [0, 23], sizes = [2, 1], strides = [1, 1]} : vector<2x32xf32> to vector<2x1xf32>
    %199 = vector.extract_strided_slice %57 {offsets = [23, 0], sizes = [1, 128], strides = [1, 1]} : vector<32x128xf32> to vector<1x128xf32>
    %200 = vector.broadcast %198 : vector<2x1xf32> to vector<2x128xf32>
    %201 = vector.broadcast %199 : vector<1x128xf32> to vector<2x128xf32>
    %202 = arith.mulf %200, %201 : vector<2x128xf32>
    %203 = arith.addf %197, %202 : vector<2x128xf32>
    %204 = vector.extract_strided_slice %2 {offsets = [0, 24], sizes = [2, 1], strides = [1, 1]} : vector<2x32xf32> to vector<2x1xf32>
    %205 = vector.extract_strided_slice %57 {offsets = [24, 0], sizes = [1, 128], strides = [1, 1]} : vector<32x128xf32> to vector<1x128xf32>
    %206 = vector.broadcast %204 : vector<2x1xf32> to vector<2x128xf32>
    %207 = vector.broadcast %205 : vector<1x128xf32> to vector<2x128xf32>
    %208 = arith.mulf %206, %207 : vector<2x128xf32>
    %209 = arith.addf %203, %208 : vector<2x128xf32>
    %210 = vector.extract_strided_slice %2 {offsets = [0, 25], sizes = [2, 1], strides = [1, 1]} : vector<2x32xf32> to vector<2x1xf32>
    %211 = vector.extract_strided_slice %57 {offsets = [25, 0], sizes = [1, 128], strides = [1, 1]} : vector<32x128xf32> to vector<1x128xf32>
    %212 = vector.broadcast %210 : vector<2x1xf32> to vector<2x128xf32>
    %213 = vector.broadcast %211 : vector<1x128xf32> to vector<2x128xf32>
    %214 = arith.mulf %212, %213 : vector<2x128xf32>
    %215 = arith.addf %209, %214 : vector<2x128xf32>
    %216 = vector.extract_strided_slice %2 {offsets = [0, 26], sizes = [2, 1], strides = [1, 1]} : vector<2x32xf32> to vector<2x1xf32>
    %217 = vector.extract_strided_slice %57 {offsets = [26, 0], sizes = [1, 128], strides = [1, 1]} : vector<32x128xf32> to vector<1x128xf32>
    %218 = vector.broadcast %216 : vector<2x1xf32> to vector<2x128xf32>
    %219 = vector.broadcast %217 : vector<1x128xf32> to vector<2x128xf32>
    %220 = arith.mulf %218, %219 : vector<2x128xf32>
    %221 = arith.addf %215, %220 : vector<2x128xf32>
    %222 = vector.extract_strided_slice %2 {offsets = [0, 27], sizes = [2, 1], strides = [1, 1]} : vector<2x32xf32> to vector<2x1xf32>
    %223 = vector.extract_strided_slice %57 {offsets = [27, 0], sizes = [1, 128], strides = [1, 1]} : vector<32x128xf32> to vector<1x128xf32>
    %224 = vector.broadcast %222 : vector<2x1xf32> to vector<2x128xf32>
    %225 = vector.broadcast %223 : vector<1x128xf32> to vector<2x128xf32>
    %226 = arith.mulf %224, %225 : vector<2x128xf32>
    %227 = arith.addf %221, %226 : vector<2x128xf32>
    %228 = vector.extract_strided_slice %2 {offsets = [0, 28], sizes = [2, 1], strides = [1, 1]} : vector<2x32xf32> to vector<2x1xf32>
    %229 = vector.extract_strided_slice %57 {offsets = [28, 0], sizes = [1, 128], strides = [1, 1]} : vector<32x128xf32> to vector<1x128xf32>
    %230 = vector.broadcast %228 : vector<2x1xf32> to vector<2x128xf32>
    %231 = vector.broadcast %229 : vector<1x128xf32> to vector<2x128xf32>
    %232 = arith.mulf %230, %231 : vector<2x128xf32>
    %233 = arith.addf %227, %232 : vector<2x128xf32>
    %234 = vector.extract_strided_slice %2 {offsets = [0, 29], sizes = [2, 1], strides = [1, 1]} : vector<2x32xf32> to vector<2x1xf32>
    %235 = vector.extract_strided_slice %57 {offsets = [29, 0], sizes = [1, 128], strides = [1, 1]} : vector<32x128xf32> to vector<1x128xf32>
    %236 = vector.broadcast %234 : vector<2x1xf32> to vector<2x128xf32>
    %237 = vector.broadcast %235 : vector<1x128xf32> to vector<2x128xf32>
    %238 = arith.mulf %236, %237 : vector<2x128xf32>
    %239 = arith.addf %233, %238 : vector<2x128xf32>
    %240 = vector.extract_strided_slice %2 {offsets = [0, 30], sizes = [2, 1], strides = [1, 1]} : vector<2x32xf32> to vector<2x1xf32>
    %241 = vector.extract_strided_slice %57 {offsets = [30, 0], sizes = [1, 128], strides = [1, 1]} : vector<32x128xf32> to vector<1x128xf32>
    %242 = vector.broadcast %240 : vector<2x1xf32> to vector<2x128xf32>
    %243 = vector.broadcast %241 : vector<1x128xf32> to vector<2x128xf32>
    %244 = arith.mulf %242, %243 : vector<2x128xf32>
    %245 = arith.addf %239, %244 : vector<2x128xf32>
    %246 = vector.extract_strided_slice %2 {offsets = [0, 31], sizes = [2, 1], strides = [1, 1]} : vector<2x32xf32> to vector<2x1xf32>
    %247 = vector.extract_strided_slice %57 {offsets = [31, 0], sizes = [1, 128], strides = [1, 1]} : vector<32x128xf32> to vector<1x128xf32>
    %248 = vector.broadcast %246 : vector<2x1xf32> to vector<2x128xf32>
    %249 = vector.broadcast %247 : vector<1x128xf32> to vector<2x128xf32>
    %250 = arith.mulf %248, %249 : vector<2x128xf32>
    %251 = arith.addf %245, %250 : vector<2x128xf32>
    %c0_10 = arith.constant 0 : index
    %c0_11 = arith.constant 0 : index
    %252 = vector.load %arg6[%c0_10, %c0_11] : memref<2x128xf32, #tpu.memory_space<vmem>>, vector<2x128xf32>
    tpu.vector_store %arg6[%c0_10, %c0_11], %251 {strides = array<i32>} : memref<2x128xf32, #tpu.memory_space<vmem>>, vector<2x128xf32>,
    return
  }
  func.func @transform_0(%arg0: i32) -> (i32, i32) {
    %c0_i32 = arith.constant 0 : i32
    %c0_i32_0 = arith.constant 0 : i32
    return %c0_i32, %arg0 : i32, i32
  }
  func.func @transform_1(%arg0: i32) -> (i32, i32) {
    %c0_i32 = arith.constant 0 : i32
    %c0_i32_0 = arith.constant 0 : i32
    %c0_i32_1 = arith.constant 0 : i32
    return %c0_i32, %c0_i32_0 : i32, i32
  }
  func.func @transform_2(%arg0: i32) -> (i32, i32) {
    %c0_i32 = arith.constant 0 : i32
    %c0_i32_0 = arith.constant 0 : i32
    %c0_i32_1 = arith.constant 0 : i32
    return %c0_i32, %c0_i32_0 : i32, i32
  }
  func.func @transform_3(%arg0: i32) -> (i32, i32) {
    %c0_i32 = arith.constant 0 : i32
    %c0_i32_0 = arith.constant 0 : i32
    %c0_i32_1 = arith.constant 0 : i32
    return %c0_i32, %c0_i32_0 : i32, i32
  }
  func.func @transform_4(%arg0: i32) -> (i32, i32) {
    %c0_i32 = arith.constant 0 : i32
    %c0_i32_0 = arith.constant 0 : i32
    %c0_i32_1 = arith.constant 0 : i32
    return %c0_i32, %c0_i32_0 : i32, i32
  }
  func.func @transform_5(%arg0: i32) -> (i32, i32) {
    %c0_i32 = arith.constant 0 : i32
    %c0_i32_0 = arith.constant 0 : i32
    return %c0_i32, %arg0 : i32, i32
  }
}

</mosaic_0001>

<llo_original>
// kernel: tpu_custom_call.1
$region0: #{tpu_custom_call.1}
  #allocation0 [shape = 'u32[]', space=smem, size = 0x4, offset = 0x4, fixed_abs, tag = 'smem constant byte address 0x4 - core index']
  #allocation1 [shape = 'u32[144,128]{1,0:T(1,128)}', space=vmem, size = 0x12000, scoped, tag = 'internal scratch']
  %s0 = inlined_call_operand.vmem [shape: f32[8,128], index: 0, kind: input, shape index: {}]
  %s1 = inlined_call_operand.vmem [shape: f32[32,8], index: 1, kind: input, shape index: {}]
  %s2 = inlined_call_operand.vmem [shape: f32[32,1], index: 2, kind: input, shape index: {}]
  %s3 = inlined_call_operand.vmem [shape: f32[2,32], index: 3, kind: input, shape index: {}]
  %s4 = inlined_call_operand.vmem [shape: f32[2,1], index: 4, kind: input, shape index: {}]
  %s5 = inlined_call_operand.hbm [shape: f32[2,128], index: 5, kind: output, shape index: {}]
  %s6 = sld [smem:[#allocation0]]
  $region30: #{tpu_custom_call.1} parent=0
    _
  %s8 = ssub.s32 1, %s6
  %s9 = scalar_select 0, %s8, %s6
  $region1: #{tpu_custom_call.1} parent=0
    #allocation2 [shape = 'u8[1024]{0}', space=vmem, size = 0x400, scoped, tag = 'output window, operand 0, single buffered']
    #allocation3 [shape = 's32[1]{0}', space=sflag, size = 0x4, scoped, tag = 'scoped memory for tpu_custom_call.1']
    %10 = vsyncpa [#allocation3], 0
    // Predicated region
    $region2: #{tpu_custom_call.1} parent=1 // pred_check
      _
    $region3: #{tpu_custom_call.1} parent=1 // pred_check_branch
      %12 = sbr.rel (0) target = $region5
    $region4: #{tpu_custom_call.1} parent=1 // pred_region
      _
    $region5: #{tpu_custom_call.1} parent=1 // pred_fallthru
      _
    // Predicated region
    $region6: #{tpu_custom_call.1} parent=1 // pred_check
      _
    $region7: #{tpu_custom_call.1} parent=1 // pred_check_branch
      %14 = sbr.rel (0) target = $region9
    $region8: #{tpu_custom_call.1} parent=1 // pred_region
      _
    $region9: #{tpu_custom_call.1} parent=1 // pred_fallthru
      _
    // Predicated region
    $region10: #{tpu_custom_call.1} parent=1 // pred_check
      _
    $region11: #{tpu_custom_call.1} parent=1 // pred_check_branch
      %16 = sbr.rel (0) target = $region13
    $region12: #{tpu_custom_call.1} parent=1 // pred_region
      _
    $region13: #{tpu_custom_call.1} parent=1 // pred_fallthru
      _
    // Predicated region
    $region14: #{tpu_custom_call.1} parent=1 // pred_check
      _
    $region15: #{tpu_custom_call.1} parent=1 // pred_check_branch
      %18 = sbr.rel (0) target = $region17
    $region16: #{tpu_custom_call.1} parent=1 // pred_region
      _
    $region17: #{tpu_custom_call.1} parent=1 // pred_fallthru
      _
    // Predicated region
    $region18: #{tpu_custom_call.1} parent=1 // pred_check
      _
    $region19: #{tpu_custom_call.1} parent=1 // pred_check_branch
      %20 = sbr.rel (0) target = $region21
    $region20: #{tpu_custom_call.1} parent=1 // pred_region
      _
    $region21: #{tpu_custom_call.1} parent=1 // pred_fallthru
      _
    %v21 = vld [vmem:[%s0] sm:$0xff]
    %v22 = vld [vmem:[%s1] sm:$0xff]
    %v23 = vld [vmem:[%s1 + $0x8] sm:$0xff]
    %v24 = vld [vmem:[%s1 + $0x10] sm:$0xff]
    %v25 = vld [vmem:[%s1 + $0x18] sm:$0xff]
    %v26 = vld [vmem:[%s3] sm:$0x3]
    %28 = vset.pattern.permute.xlu0 0
    %29 = vperm.xlu0 %28, %v22
    %v30 = vpop.permute.xlu0 %29
    %33 = vset.pattern.permute.xlu0 0
    %34 = vperm.xlu0 %33, %v23
    %v35 = vpop.permute.xlu0 %34
    %38 = vset.pattern.permute.xlu0 0
    %39 = vperm.xlu0 %38, %v24
    %v40 = vpop.permute.xlu0 %39
    %43 = vset.pattern.permute.xlu0 0
    %44 = vperm.xlu0 %43, %v25
    %v45 = vpop.permute.xlu0 %44
    %v47 = vlaneseq
    %v48 = vshrl.u32 %v47, 7
    %v49 = vsub.s32 0, %v48
    %v50 = vrot.slane %v21, %v49
    %v51 = vmul.f32 %v30, %v50
    %v52 = vmul.f32 %v35, %v50
    %v53 = vmul.f32 %v40, %v50
    %v54 = vmul.f32 %v45, %v50
    %v55 = vld [vmem:[%s2] sm:$0xff]
    %v56 = vld [vmem:[%s2 + $0x8] sm:$0xff]
    %v57 = vld [vmem:[%s2 + $0x10] sm:$0xff]
    %v58 = vld [vmem:[%s2 + $0x18] sm:$0xff]
    %60 = vset.pattern.permute.xlu0 0
    %61 = vperm.xlu0 %60, %v55
    %v62 = vpop.permute.xlu0 %61
    %65 = vset.pattern.permute.xlu0 0
    %66 = vperm.xlu0 %65, %v56
    %v67 = vpop.permute.xlu0 %66
    %70 = vset.pattern.permute.xlu0 0
    %71 = vperm.xlu0 %70, %v57
    %v72 = vpop.permute.xlu0 %71
    %75 = vset.pattern.permute.xlu0 0
    %76 = vperm.xlu0 %75, %v58
    %v77 = vpop.permute.xlu0 %76
    %v79 = vadd.f32 %v51, %v62
    %v80 = vadd.f32 %v52, %v67
    %v81 = vadd.f32 %v53, %v72
    %v82 = vadd.f32 %v54, %v77
    %83 = vset.pattern.permute.xlu0 1
    %84 = vperm.xlu0 %83, %v22
    %v85 = vpop.permute.xlu0 %84
    %87 = vset.pattern.permute.xlu0 1
    %88 = vperm.xlu0 %87, %v23
    %v89 = vpop.permute.xlu0 %88
    %91 = vset.pattern.permute.xlu0 1
    %92 = vperm.xlu0 %91, %v24
    %v93 = vpop.permute.xlu0 %92
    %95 = vset.pattern.permute.xlu0 1
    %96 = vperm.xlu0 %95, %v25
    %v97 = vpop.permute.xlu0 %96
    %v99 = vlaneseq
    %v100 = vshrl.u32 %v99, 7
    %v101 = vsub.s32 1, %v100
    %v102 = vrot.slane %v21, %v101
    %v103 = vmul.f32 %v85, %v102
    %v104 = vmul.f32 %v89, %v102
    %v105 = vmul.f32 %v93, %v102
    %v106 = vmul.f32 %v97, %v102
    %v107 = vadd.f32 %v79, %v103
    %v108 = vadd.f32 %v80, %v104
    %v109 = vadd.f32 %v81, %v105
    %v110 = vadd.f32 %v82, %v106
    %111 = vset.pattern.permute.xlu0 2
    %112 = vperm.xlu0 %111, %v22
    %v113 = vpop.permute.xlu0 %112
    %115 = vset.pattern.permute.xlu0 2
    %116 = vperm.xlu0 %115, %v23
    %v117 = vpop.permute.xlu0 %116
    %119 = vset.pattern.permute.xlu0 2
    %120 = vperm.xlu0 %119, %v24
    %v121 = vpop.permute.xlu0 %120
    %123 = vset.pattern.permute.xlu0 2
    %124 = vperm.xlu0 %123, %v25
    %v125 = vpop.permute.xlu0 %124
    %v127 = vlaneseq
    %v128 = vshrl.u32 %v127, 7
    %v129 = vsub.s32 2, %v128
    %v130 = vrot.slane %v21, %v129
    %v131 = vmul.f32 %v113, %v130
    %v132 = vmul.f32 %v117, %v130
    %v133 = vmul.f32 %v121, %v130
    %v134 = vmul.f32 %v125, %v130
    %v135 = vadd.f32 %v107, %v131
    %v136 = vadd.f32 %v108, %v132
    %v137 = vadd.f32 %v109, %v133
    %v138 = vadd.f32 %v110, %v134
    %139 = vset.pattern.permute.xlu0 3
    %140 = vperm.xlu0 %139, %v22
    %v141 = vpop.permute.xlu0 %140
    %143 = vset.pattern.permute.xlu0 3
    %144 = vperm.xlu0 %143, %v23
    %v145 = vpop.permute.xlu0 %144
    %147 = vset.pattern.permute.xlu0 3
    %148 = vperm.xlu0 %147, %v24
    %v149 = vpop.permute.xlu0 %148
    %151 = vset.pattern.permute.xlu0 3
    %152 = vperm.xlu0 %151, %v25
    %v153 = vpop.permute.xlu0 %152
    %v155 = vlaneseq
    %v156 = vshrl.u32 %v155, 7
    %v157 = vsub.s32 3, %v156
    %v158 = vrot.slane %v21, %v157
    %v159 = vmul.f32 %v141, %v158
    %v160 = vmul.f32 %v145, %v158
    %v161 = vmul.f32 %v149, %v158
    %v162 = vmul.f32 %v153, %v158
    %v163 = vadd.f32 %v135, %v159
    %v164 = vadd.f32 %v136, %v160
    %v165 = vadd.f32 %v137, %v161
    %v166 = vadd.f32 %v138, %v162
    %167 = vset.pattern.permute.xlu0 4
    %168 = vperm.xlu0 %167, %v22
    %v169 = vpop.permute.xlu0 %168
    %171 = vset.pattern.permute.xlu0 4
    %172 = vperm.xlu0 %171, %v23
    %v173 = vpop.permute.xlu0 %172
    %175 = vset.pattern.permute.xlu0 4
    %176 = vperm.xlu0 %175, %v24
    %v177 = vpop.permute.xlu0 %176
    %179 = vset.pattern.permute.xlu0 4
    %180 = vperm.xlu0 %179, %v25
    %v181 = vpop.permute.xlu0 %180
    %v183 = vlaneseq
    %v184 = vshrl.u32 %v183, 7
    %v185 = vsub.s32 4, %v184
    %v186 = vrot.slane %v21, %v185
    %v187 = vmul.f32 %v169, %v186
    %v188 = vmul.f32 %v173, %v186
    %v189 = vmul.f32 %v177, %v186
    %v190 = vmul.f32 %v181, %v186
    %v191 = vadd.f32 %v163, %v187
    %v192 = vadd.f32 %v164, %v188
    %v193 = vadd.f32 %v165, %v189
    %v194 = vadd.f32 %v166, %v190
    %195 = vset.pattern.permute.xlu0 5
    %196 = vperm.xlu0 %195, %v22
    %v197 = vpop.permute.xlu0 %196
    %199 = vset.pattern.permute.xlu0 5
    %200 = vperm.xlu0 %199, %v23
    %v201 = vpop.permute.xlu0 %200
    %203 = vset.pattern.permute.xlu0 5
    %204 = vperm.xlu0 %203, %v24
    %v205 = vpop.permute.xlu0 %204
    %207 = vset.pattern.permute.xlu0 5
    %208 = vperm.xlu0 %207, %v25
    %v209 = vpop.permute.xlu0 %208
    %v211 = vlaneseq
    %v212 = vshrl.u32 %v211, 7
    %v213 = vsub.s32 5, %v212
    %v214 = vrot.slane %v21, %v213
    %v215 = vmul.f32 %v197, %v214
    %v216 = vmul.f32 %v201, %v214
    %v217 = vmul.f32 %v205, %v214
    %v218 = vmul.f32 %v209, %v214
    %v219 = vadd.f32 %v191, %v215
    %v220 = vadd.f32 %v192, %v216
    %v221 = vadd.f32 %v193, %v217
    %v222 = vadd.f32 %v194, %v218
    %223 = vset.pattern.permute.xlu0 6
    %224 = vperm.xlu0 %223, %v22
    %v225 = vpop.permute.xlu0 %224
    %227 = vset.pattern.permute.xlu0 6
    %228 = vperm.xlu0 %227, %v23
    %v229 = vpop.permute.xlu0 %228
    %231 = vset.pattern.permute.xlu0 6
    %232 = vperm.xlu0 %231, %v24
    %v233 = vpop.permute.xlu0 %232
    %235 = vset.pattern.permute.xlu0 6
    %236 = vperm.xlu0 %235, %v25
    %v237 = vpop.permute.xlu0 %236
    %v239 = vlaneseq
    %v240 = vshrl.u32 %v239, 7
    %v241 = vsub.s32 6, %v240
    %v242 = vrot.slane %v21, %v241
    %v243 = vmul.f32 %v225, %v242
    %v244 = vmul.f32 %v229, %v242
    %v245 = vmul.f32 %v233, %v242
    %v246 = vmul.f32 %v237, %v242
    %v247 = vadd.f32 %v219, %v243
    %v248 = vadd.f32 %v220, %v244
    %v249 = vadd.f32 %v221, %v245
    %v250 = vadd.f32 %v222, %v246
    %251 = vset.pattern.permute.xlu0 7
    %252 = vperm.xlu0 %251, %v22
    %v253 = vpop.permute.xlu0 %252
    %255 = vset.pattern.permute.xlu0 7
    %256 = vperm.xlu0 %255, %v23
    %v257 = vpop.permute.xlu0 %256
    %259 = vset.pattern.permute.xlu0 7
    %260 = vperm.xlu0 %259, %v24
    %v261 = vpop.permute.xlu0 %260
    %263 = vset.pattern.permute.xlu0 7
    %264 = vperm.xlu0 %263, %v25
    %v265 = vpop.permute.xlu0 %264
    %v267 = vlaneseq
    %v268 = vshrl.u32 %v267, 7
    %v269 = vsub.s32 7, %v268
    %v270 = vrot.slane %v21, %v269
    %v271 = vmul.f32 %v253, %v270
    %v272 = vmul.f32 %v257, %v270
    %v273 = vmul.f32 %v261, %v270
    %v274 = vmul.f32 %v265, %v270
    %v275 = vadd.f32 %v247, %v271
    %v276 = vadd.f32 %v248, %v272
    %v277 = vadd.f32 %v249, %v273
    %v278 = vadd.f32 %v250, %v274
    %vm279 = vcmp.gt.f32.partialorder %v275, 0.0
    %vm280 = vcmp.gt.f32.partialorder %v276, 0.0
    %vm281 = vcmp.gt.f32.partialorder %v277, 0.0
    %vm282 = vcmp.gt.f32.partialorder %v278, 0.0
    %v283 = vmul.f32 %v275, 0.2
    %v284 = vmul.f32 %v276, 0.2
    %v285 = vmul.f32 %v277, 0.2
    %v286 = vmul.f32 %v278, 0.2
    %v287 = vsel %vm279, %v275, %v283
    %v288 = vsel %vm280, %v276, %v284
    %v289 = vsel %vm281, %v277, %v285
    %v290 = vsel %vm282, %v278, %v286
    %292 = vset.pattern.permute.xlu0 0
    %293 = vperm.xlu0 %292, %v26
    %v294 = vpop.permute.xlu0 %293
    %v296 = vlaneseq
    %v297 = vshrl.u32 %v296, 7
    %v298 = vsub.s32 0, %v297
    %v299 = vrot.slane %v287, %v298
    %v300 = vmul.f32 %v294, %v299
    %v301 = vld [vmem:[%s4] sm:$0x3]
    %303 = vset.pattern.permute.xlu0 0
    %304 = vperm.xlu0 %303, %v301
    %v305 = vpop.permute.xlu0 %304
    %v307 = vadd.f32 %v300, %v305
    %308 = vset.pattern.permute.xlu0 1
    %309 = vperm.xlu0 %308, %v26
    %v310 = vpop.permute.xlu0 %309
    %v312 = vlaneseq
    %v313 = vshrl.u32 %v312, 7
    %v314 = vsub.s32 1, %v313
    %v315 = vrot.slane %v287, %v314
    %v316 = vmul.f32 %v310, %v315
    %v317 = vadd.f32 %v307, %v316
    %318 = vset.pattern.permute.xlu0 2
    %319 = vperm.xlu0 %318, %v26
    %v320 = vpop.permute.xlu0 %319
    %v322 = vlaneseq
    %v323 = vshrl.u32 %v322, 7
    %v324 = vsub.s32 2, %v323
    %v325 = vrot.slane %v287, %v324
    %v326 = vmul.f32 %v320, %v325
    %v327 = vadd.f32 %v317, %v326
    %328 = vset.pattern.permute.xlu0 3
    %329 = vperm.xlu0 %328, %v26
    %v330 = vpop.permute.xlu0 %329
    %v332 = vlaneseq
    %v333 = vshrl.u32 %v332, 7
    %v334 = vsub.s32 3, %v333
    %v335 = vrot.slane %v287, %v334
    %v336 = vmul.f32 %v330, %v335
    %v337 = vadd.f32 %v327, %v336
    %338 = vset.pattern.permute.xlu0 4
    %339 = vperm.xlu0 %338, %v26
    %v340 = vpop.permute.xlu0 %339
    %v342 = vlaneseq
    %v343 = vshrl.u32 %v342, 7
    %v344 = vsub.s32 4, %v343
    %v345 = vrot.slane %v287, %v344
    %v346 = vmul.f32 %v340, %v345
    %v347 = vadd.f32 %v337, %v346
    %348 = vset.pattern.permute.xlu0 5
    %349 = vperm.xlu0 %348, %v26
    %v350 = vpop.permute.xlu0 %349
    %v352 = vlaneseq
    %v353 = vshrl.u32 %v352, 7
    %v354 = vsub.s32 5, %v353
    %v355 = vrot.slane %v287, %v354
    %v356 = vmul.f32 %v350, %v355
    %v357 = vadd.f32 %v347, %v356
    %358 = vset.pattern.permute.xlu0 6
    %359 = vperm.xlu0 %358, %v26
    %v360 = vpop.permute.xlu0 %359
    %v362 = vlaneseq
    %v363 = vshrl.u32 %v362, 7
    %v364 = vsub.s32 6, %v363
    %v365 = vrot.slane %v287, %v364
    %v366 = vmul.f32 %v360, %v365
    %v367 = vadd.f32 %v357, %v366
    %368 = vset.pattern.permute.xlu0 7
    %369 = vperm.xlu0 %368, %v26
    %v370 = vpop.permute.xlu0 %369
    %v372 = vlaneseq
    %v373 = vshrl.u32 %v372, 7
    %v374 = vsub.s32 7, %v373
    %v375 = vrot.slane %v287, %v374
    %v376 = vmul.f32 %v370, %v375
    %v377 = vadd.f32 %v367, %v376
    %378 = vset.pattern.permute.xlu0 8
    %379 = vperm.xlu0 %378, %v26
    %v380 = vpop.permute.xlu0 %379
    %v382 = vlaneseq
    %v383 = vshrl.u32 %v382, 7
    %v384 = vsub.s32 0, %v383
    %v385 = vrot.slane %v288, %v384
    %v386 = vmul.f32 %v380, %v385
    %v387 = vadd.f32 %v377, %v386
    %388 = vset.pattern.permute.xlu0 9
    %389 = vperm.xlu0 %388, %v26
    %v390 = vpop.permute.xlu0 %389
    %v392 = vlaneseq
    %v393 = vshrl.u32 %v392, 7
    %v394 = vsub.s32 1, %v393
    %v395 = vrot.slane %v288, %v394
    %v396 = vmul.f32 %v390, %v395
    %v397 = vadd.f32 %v387, %v396
    %398 = vset.pattern.permute.xlu0 10
    %399 = vperm.xlu0 %398, %v26
    %v400 = vpop.permute.xlu0 %399
    %v402 = vlaneseq
    %v403 = vshrl.u32 %v402, 7
    %v404 = vsub.s32 2, %v403
    %v405 = vrot.slane %v288, %v404
    %v406 = vmul.f32 %v400, %v405
    %v407 = vadd.f32 %v397, %v406
    %408 = vset.pattern.permute.xlu0 11
    %409 = vperm.xlu0 %408, %v26
    %v410 = vpop.permute.xlu0 %409
    %v412 = vlaneseq
    %v413 = vshrl.u32 %v412, 7
    %v414 = vsub.s32 3, %v413
    %v415 = vrot.slane %v288, %v414
    %v416 = vmul.f32 %v410, %v415
    %v417 = vadd.f32 %v407, %v416
    %418 = vset.pattern.permute.xlu0 12
    %419 = vperm.xlu0 %418, %v26
    %v420 = vpop.permute.xlu0 %419
    %v422 = vlaneseq
    %v423 = vshrl.u32 %v422, 7
    %v424 = vsub.s32 4, %v423
    %v425 = vrot.slane %v288, %v424
    %v426 = vmul.f32 %v420, %v425
    %v427 = vadd.f32 %v417, %v426
    %428 = vset.pattern.permute.xlu0 13
    %429 = vperm.xlu0 %428, %v26
    %v430 = vpop.permute.xlu0 %429
    %v432 = vlaneseq
    %v433 = vshrl.u32 %v432, 7
    %v434 = vsub.s32 5, %v433
    %v435 = vrot.slane %v288, %v434
    %v436 = vmul.f32 %v430, %v435
    %v437 = vadd.f32 %v427, %v436
    %438 = vset.pattern.permute.xlu0 14
    %439 = vperm.xlu0 %438, %v26
    %v440 = vpop.permute.xlu0 %439
    %v442 = vlaneseq
    %v443 = vshrl.u32 %v442, 7
    %v444 = vsub.s32 6, %v443
    %v445 = vrot.slane %v288, %v444
    %v446 = vmul.f32 %v440, %v445
    %v447 = vadd.f32 %v437, %v446
    %448 = vset.pattern.permute.xlu0 15
    %449 = vperm.xlu0 %448, %v26
    %v450 = vpop.permute.xlu0 %449
    %v452 = vlaneseq
    %v453 = vshrl.u32 %v452, 7
    %v454 = vsub.s32 7, %v453
    %v455 = vrot.slane %v288, %v454
    %v456 = vmul.f32 %v450, %v455
    %v457 = vadd.f32 %v447, %v456
    %458 = vset.pattern.permute.xlu0 16
    %459 = vperm.xlu0 %458, %v26
    %v460 = vpop.permute.xlu0 %459
    %v462 = vlaneseq
    %v463 = vshrl.u32 %v462, 7
    %v464 = vsub.s32 0, %v463
    %v465 = vrot.slane %v289, %v464
    %v466 = vmul.f32 %v460, %v465
    %v467 = vadd.f32 %v457, %v466
    %468 = vset.pattern.permute.xlu0 17
    %469 = vperm.xlu0 %468, %v26
    %v470 = vpop.permute.xlu0 %469
    %v472 = vlaneseq
    %v473 = vshrl.u32 %v472, 7
    %v474 = vsub.s32 1, %v473
    %v475 = vrot.slane %v289, %v474
    %v476 = vmul.f32 %v470, %v475
    %v477 = vadd.f32 %v467, %v476
    %478 = vset.pattern.permute.xlu0 18
    %479 = vperm.xlu0 %478, %v26
    %v480 = vpop.permute.xlu0 %479
    %v482 = vlaneseq
    %v483 = vshrl.u32 %v482, 7
    %v484 = vsub.s32 2, %v483
    %v485 = vrot.slane %v289, %v484
    %v486 = vmul.f32 %v480, %v485
    %v487 = vadd.f32 %v477, %v486
    %488 = vset.pattern.permute.xlu0 19
    %489 = vperm.xlu0 %488, %v26
    %v490 = vpop.permute.xlu0 %489
    %v492 = vlaneseq
    %v493 = vshrl.u32 %v492, 7
    %v494 = vsub.s32 3, %v493
    %v495 = vrot.slane %v289, %v494
    %v496 = vmul.f32 %v490, %v495
    %v497 = vadd.f32 %v487, %v496
    %498 = vset.pattern.permute.xlu0 20
    %499 = vperm.xlu0 %498, %v26
    %v500 = vpop.permute.xlu0 %499
    %v502 = vlaneseq
    %v503 = vshrl.u32 %v502, 7
    %v504 = vsub.s32 4, %v503
    %v505 = vrot.slane %v289, %v504
    %v506 = vmul.f32 %v500, %v505
    %v507 = vadd.f32 %v497, %v506
    %508 = vset.pattern.permute.xlu0 21
    %509 = vperm.xlu0 %508, %v26
    %v510 = vpop.permute.xlu0 %509
    %v512 = vlaneseq
    %v513 = vshrl.u32 %v512, 7
    %v514 = vsub.s32 5, %v513
    %v515 = vrot.slane %v289, %v514
    %v516 = vmul.f32 %v510, %v515
    %v517 = vadd.f32 %v507, %v516
    %518 = vset.pattern.permute.xlu0 22
    %519 = vperm.xlu0 %518, %v26
    %v520 = vpop.permute.xlu0 %519
    %v522 = vlaneseq
    %v523 = vshrl.u32 %v522, 7
    %v524 = vsub.s32 6, %v523
    %v525 = vrot.slane %v289, %v524
    %v526 = vmul.f32 %v520, %v525
    %v527 = vadd.f32 %v517, %v526
    %528 = vset.pattern.permute.xlu0 23
    %529 = vperm.xlu0 %528, %v26
    %v530 = vpop.permute.xlu0 %529
    %v532 = vlaneseq
    %v533 = vshrl.u32 %v532, 7
    %v534 = vsub.s32 7, %v533
    %v535 = vrot.slane %v289, %v534
    %v536 = vmul.f32 %v530, %v535
    %v537 = vadd.f32 %v527, %v536
    %538 = vset.pattern.permute.xlu0 24
    %539 = vperm.xlu0 %538, %v26
    %v540 = vpop.permute.xlu0 %539
    %v542 = vlaneseq
    %v543 = vshrl.u32 %v542, 7
    %v544 = vsub.s32 0, %v543
    %v545 = vrot.slane %v290, %v544
    %v546 = vmul.f32 %v540, %v545
    %v547 = vadd.f32 %v537, %v546
    %548 = vset.pattern.permute.xlu0 25
    %549 = vperm.xlu0 %548, %v26
    %v550 = vpop.permute.xlu0 %549
    %v552 = vlaneseq
    %v553 = vshrl.u32 %v552, 7
    %v554 = vsub.s32 1, %v553
    %v555 = vrot.slane %v290, %v554
    %v556 = vmul.f32 %v550, %v555
    %v557 = vadd.f32 %v547, %v556
    %558 = vset.pattern.permute.xlu0 26
    %559 = vperm.xlu0 %558, %v26
    %v560 = vpop.permute.xlu0 %559
    %v562 = vlaneseq
    %v563 = vshrl.u32 %v562, 7
    %v564 = vsub.s32 2, %v563
    %v565 = vrot.slane %v290, %v564
    %v566 = vmul.f32 %v560, %v565
    %v567 = vadd.f32 %v557, %v566
    %568 = vset.pattern.permute.xlu0 27
    %569 = vperm.xlu0 %568, %v26
    %v570 = vpop.permute.xlu0 %569
    %v572 = vlaneseq
    %v573 = vshrl.u32 %v572, 7
    %v574 = vsub.s32 3, %v573
    %v575 = vrot.slane %v290, %v574
    %v576 = vmul.f32 %v570, %v575
    %v577 = vadd.f32 %v567, %v576
    %578 = vset.pattern.permute.xlu0 28
    %579 = vperm.xlu0 %578, %v26
    %v580 = vpop.permute.xlu0 %579
    %v582 = vlaneseq
    %v583 = vshrl.u32 %v582, 7
    %v584 = vsub.s32 4, %v583
    %v585 = vrot.slane %v290, %v584
    %v586 = vmul.f32 %v580, %v585
    %v587 = vadd.f32 %v577, %v586
    %588 = vset.pattern.permute.xlu0 29
    %589 = vperm.xlu0 %588, %v26
    %v590 = vpop.permute.xlu0 %589
    %v592 = vlaneseq
    %v593 = vshrl.u32 %v592, 7
    %v594 = vsub.s32 5, %v593
    %v595 = vrot.slane %v290, %v594
    %v596 = vmul.f32 %v590, %v595
    %v597 = vadd.f32 %v587, %v596
    %598 = vset.pattern.permute.xlu0 30
    %599 = vperm.xlu0 %598, %v26
    %v600 = vpop.permute.xlu0 %599
    %v602 = vlaneseq
    %v603 = vshrl.u32 %v602, 7
    %v604 = vsub.s32 6, %v603
    %v605 = vrot.slane %v290, %v604
    %v606 = vmul.f32 %v600, %v605
    %v607 = vadd.f32 %v597, %v606
    %608 = vset.pattern.permute.xlu0 31
    %609 = vperm.xlu0 %608, %v26
    %v610 = vpop.permute.xlu0 %609
    %v612 = vlaneseq
    %v613 = vshrl.u32 %v612, 7
    %v614 = vsub.s32 7, %v613
    %v615 = vrot.slane %v290, %v614
    %v616 = vmul.f32 %v610, %v615
    %v617 = vadd.f32 %v607, %v616
    %618 = vst [vmem:[#allocation2] sm:$0x3] %v617
    // Predicated region
    $region22: #{tpu_custom_call.1} parent=1 // pred_check
      _
    $region23: #{tpu_custom_call.1} parent=1 // pred_check_branch
      %620 = sbr.rel (0) target = $region25
    $region24: #{tpu_custom_call.1} parent=1 // pred_region
      %s622 = ssub.s32 32, 32
      %623 = vsyncadd [#allocation3], %s622
      %s625 = sshll.u32 [#allocation2], 4
      %s626 = int_to_ptr.vmem [resolvable:$true] %s625
      %628 = dma.vmem_to_hbm [thread:$0]  %s626, 32, %s5, [#allocation3]
    $region25: #{tpu_custom_call.1} parent=1 // pred_fallthru
      _
    // Predicated region
    $region26: #{tpu_custom_call.1} parent=1 // pred_check
      _
    $region27: #{tpu_custom_call.1} parent=1 // pred_check_branch
      %630 = sbr.rel (0) target = $region29
    $region28: #{tpu_custom_call.1} parent=1 // pred_region
      %631 = dma.done [#allocation3], 32
    $region29: #{tpu_custom_call.1} parent=1 // pred_fallthru
      _
    %632 = vsyncpa [#allocation3], 1

</llo_original>
